<compile_context>
chip_gen: v5e
topology: v5e:2x2
jax: 0.10.0
libtpu: 0.0.40
codegen_flags: <defaults>
</compile_context>

<pallas_src>
import jax
import jax.numpy as jnp
import numpy as np
from jax import lax
from jax.experimental import pallas as pl
from jax.experimental.pallas import tpu as pltpu


def _q_convtranspose_kernel(x_ref, w_ref, bias_ref, o_ref):
    """One (batch, pixel-tile) grid step: fused matmul + bias + ReLU.

    x_ref:    (1, C1, T)       bf16 input (channels on sublanes, pixels on lanes)
    w_ref:    (K*K*C2, C1)     bf16 weights, BN scale pre-folded
    bias_ref: (K*K*C2, 1)      f32 folded BN bias
    o_ref:    (1, K*K*C2, T)   f32 output (depth-to-space done in the wrapper)
    """
    y = jnp.dot(w_ref[...], x_ref[0], preferred_element_type=jnp.float32)
    y = jnp.maximum(y + bias_ref[...], 0.0)
    o_ref[0] = y.astype(o_ref.dtype)


def _choose_pixel_tile(total_pixels, c1, kkc2,
                       vmem_budget_bytes=16 * 1024 * 1024):
    """Largest pixel tile that (a) divides H*W, (b) is a multiple of 128 so
    loads/stores are lane dense, (c) fits a double-buffered VMEM budget that is
    safe on v5e/v6e/v7x (<= 16 MiB of block buffers)."""
    # bf16 input rows pack to 16-sublane tiles, f32 output rows to 8; x2 for
    # double buffering of both the input and output blocks.
    per_pixel = 2 * (max(c1, 16) * 2 + max(kkc2, 8) * 4)
    max_t = max(128, vmem_budget_bytes // per_pixel)
    best = None
    t = 128
    while t <= min(total_pixels, max_t):
        if total_pixels % t == 0:
            best = t
        t += 128
    return best if best is not None else total_pixels  # fallback: whole image


def q_convtranspose_forward(x_nchw, weight, gamma, beta, running_mean,
                            running_var, *, stride, padding=0, eps=1e-5):
    """Q_ConvTranspose.forward (NCHW in, NCHW out).

    weight: PyTorch ConvTranspose2d layout (C_in, C_out, K, K), no bias
            (bias=False because bn=True in the module defaults).
    """
    N, C1, H, W = x_nchw.shape
    C1w, C2, K, Kw = weight.shape
    assert C1w == C1 and K == Kw
    # TODO(synk): general k != s or p > 0 needs the zero-insertion (input
    # dilation) + flipped-kernel path; the module default (k=2, s=2, p=0)
    # produces non-overlapping output blocks and is handled here.
    assert K == stride and padding == 0, "only k == s, p == 0 supported"

    HW = H * W
    KKC2 = K * K * C2

    # Fold BatchNorm (inference form) into the weights / a per-channel bias.
    scale = (gamma / jnp.sqrt(running_var + eps)).astype(jnp.float32)   # (C2,)
    bias = (beta - running_mean * scale).astype(jnp.float32)            # (C2,)

    # (C1, C2, K, K) -> (K, K, C2, C1), fold scale on C2 -> (K*K*C2, C1), bf16.
    w_t = jnp.transpose(weight.astype(jnp.float32), (2, 3, 1, 0))
    w_t = w_t * scale[None, None, :, None]
    w_t = w_t.reshape(KKC2, C1).astype(jnp.bfloat16)
    bias_t = jnp.broadcast_to(bias[None, None, :], (K, K, C2)).reshape(KKC2, 1)

    # NCHW already has the layout we want: channels on sublanes, pixels lanes.
    x_flat = x_nchw.reshape(N, C1, HW).astype(jnp.bfloat16)

    T = _choose_pixel_tile(HW, C1, KKC2)
    grid = (N, HW // T)

    out_raw = pl.pallas_call(
        _q_convtranspose_kernel,
        out_shape=jax.ShapeDtypeStruct((N, KKC2, HW), jnp.float32),
        grid_spec=pltpu.PrefetchScalarGridSpec(
            num_scalar_prefetch=0,
            grid=grid,
            in_specs=[
                pl.BlockSpec((1, C1, T), lambda n, t: (n, 0, t)),
                pl.BlockSpec((KKC2, C1), lambda n, t: (0, 0)),
                pl.BlockSpec((KKC2, 1), lambda n, t: (0, 0)),
            ],
            out_specs=pl.BlockSpec((1, KKC2, T), lambda n, t: (n, 0, t)),
        ),
        compiler_params=pltpu.CompilerParams(
            dimension_semantics=("parallel", "parallel"),
            vmem_limit_bytes=32 * 1024 * 1024),
    )(x_flat, w_t, bias_t)

    # Depth-to-space: (N, K, K, C2, H, W) -> (N, C2, H*K, W*K) == NCHW output.
    out = out_raw.reshape(N, K, K, C2, H, W)
    out = jnp.transpose(out, (0, 3, 4, 1, 5, 2))
    return out.reshape(N, C2, H * K, W * K)


def _reference(x_nchw, weight, gamma, beta, running_mean, running_var,
               *, stride, padding=0, eps=1e-5):
    """Pure-JAX reference: ConvTranspose2d as an input-dilated conv with a
    spatially flipped, channel-swapped kernel, then BN (inference) + ReLU."""
    C1, C2, K, _ = weight.shape
    x_nhwc = jnp.transpose(x_nchw, (0, 2, 3, 1))
    # (C_in, C_out, K, K) flipped spatially -> HWIO (K, K, C_in, C_out).
    w_hwio = jnp.transpose(weight[:, :, ::-1, ::-1], (2, 3, 0, 1))
    pad = K - 1 - padding
    y = lax.conv_general_dilated(
        x_nhwc, w_hwio, window_strides=(1, 1),
        padding=[(pad, pad), (pad, pad)],
        lhs_dilation=(stride, stride),
        dimension_numbers=("NHWC", "HWIO", "NHWC"))
    scale = gamma / jnp.sqrt(running_var + eps)
    bias = beta - running_mean * scale
    y = jnp.maximum(y * scale + bias, 0.0)
    return jnp.transpose(y, (0, 3, 1, 2))


if __name__ == "__main__":
    # Q_ConvTranspose(c1=4, c2=8, k=2, s=2, p=0) — module defaults, small config.
    N, C1, H, W = 2, 4, 16, 16
    C2, K, S, P = 8, 2, 2, 0

    key = jax.random.PRNGKey(0)
    kx, kw, kg, kb, km, kv = jax.random.split(key, 6)

    x = jax.random.normal(kx, (N, C1, H, W), jnp.float32)
    # ConvTranspose2d weight (no bias), layout (C_in, C_out, K, K).
    weight = jax.random.normal(kw, (C1, C2, K, K), jnp.float32) * 0.1
    # BatchNorm2d parameters / running stats (deterministic, non-trivial).
    gamma = 1.0 + 0.1 * jax.random.normal(kg, (C2,), jnp.float32)
    beta = 0.1 * jax.random.normal(kb, (C2,), jnp.float32)
    running_mean = 0.1 * jax.random.normal(km, (C2,), jnp.float32)
    running_var = jnp.abs(1.0 + 0.1 * jax.random.normal(kv, (C2,), jnp.float32))

    out = q_convtranspose_forward(x, weight, gamma, beta, running_mean,
                                  running_var, stride=S, padding=P)
    out = jax.block_until_ready(out)

    ref = _reference(x, weight, gamma, beta, running_mean, running_var,
                     stride=S, padding=P)
    # Kernel uses bf16 operands (f32 accumulation) -> loose-ish tolerance.
    np.testing.assert_allclose(np.asarray(out), np.asarray(ref),
                               rtol=3e-2, atol=3e-2)
    assert out.shape == (N, C2, H * S, W * S)

    print("KERNEL_OK")
</pallas_src>

<mosaic_0001>
module attributes {stable_mosaic.version = 11 : i64} {
  func.func @_q_convtranspose_kernel(%arg0: i32, %arg1: i32, %arg2: memref<1x4x256xbf16, #tpu.memory_space<vmem>>, %arg3: memref<32x4xbf16, #tpu.memory_space<vmem>>, %arg4: memref<32x1xf32, #tpu.memory_space<vmem>>, %arg5: memref<1x32x256xf32, #tpu.memory_space<vmem>>) attributes {dimension_semantics = [#tpu.dimension_semantics<parallel>, #tpu.dimension_semantics<parallel>], iteration_bounds = array<i64: 2, 1>, scalar_prefetch = 0 : i64, scratch_operands = 0 : i64, tpu.core_type = #tpu.core_type<tc>, window_params = [{transform_indices = @transform_0, window_bounds = array<i64: 1, 4, 256>}, {pipeline_mode = #tpu.pipeline_mode<synchronous>, transform_indices = @transform_1, window_bounds = array<i64: 32, 4>}, {pipeline_mode = #tpu.pipeline_mode<synchronous>, transform_indices = @transform_2, window_bounds = array<i64: 32, 1>}, {transform_indices = @transform_3, window_bounds = array<i64: 1, 32, 256>}]} {
    %c0 = arith.constant 0 : index
    %c0_0 = arith.constant 0 : index
    %0 = vector.load %arg3[%c0, %c0_0] : memref<32x4xbf16, #tpu.memory_space<vmem>>, vector<32x4xbf16>
    %c0_1 = arith.constant 0 : index
    %c0_2 = arith.constant 0 : index
    %c0_3 = arith.constant 0 : index
    %1 = vector.load %arg2[%c0_1, %c0_2, %c0_3] : memref<1x4x256xbf16, #tpu.memory_space<vmem>>, vector<1x4x256xbf16>
    %2 = vector.shape_cast %1 : vector<1x4x256xbf16> to vector<4x256xbf16>
    %cst = arith.constant dense<0.000000e+00> : vector<32x256xf32>
    %3 = tpu.matmul %0, %2, %cst {dimension_numbers = #tpu.dot_dimension_numbers<[1], [0], [0], [1], [0, 0, 1, 1], [], []>} : vector<32x4xbf16>, vector<4x256xbf16>, vector<32x256xf32> -> vector<32x256xf32>
    %c0_4 = arith.constant 0 : index
    %c0_5 = arith.constant 0 : index
    %4 = vector.load %arg4[%c0_4, %c0_5] : memref<32x1xf32, #tpu.memory_space<vmem>>, vector<32x1xf32>
    %5 = vector.broadcast %4 : vector<32x1xf32> to vector<32x256xf32>
    %6 = arith.addf %3, %5 : vector<32x256xf32>
    %cst_6 = arith.constant 0.000000e+00 : f32
    %7 = vector.broadcast %cst_6 : f32 to vector<32x256xf32>
    %8 = arith.maximumf %6, %7 : vector<32x256xf32>
    %c0_7 = arith.constant 0 : index
    %c0_8 = arith.constant 0 : index
    %c0_9 = arith.constant 0 : index
    %9 = vector.load %arg5[%c0_7, %c0_8, %c0_9] : memref<1x32x256xf32, #tpu.memory_space<vmem>>, vector<1x32x256xf32>
    %10 = vector.shape_cast %9 : vector<1x32x256xf32> to vector<32x256xf32>
    %11 = vector.shape_cast %8 : vector<32x256xf32> to vector<1x32x256xf32>
    tpu.vector_store %arg5[%c0_7, %c0_8, %c0_9], %11 {strides = array<i32>} : memref<1x32x256xf32, #tpu.memory_space<vmem>>, vector<1x32x256xf32>,
    return
  }
  func.func @transform_0(%arg0: i32, %arg1: i32) -> (i32, i32, i32) {
    %c0_i32 = arith.constant 0 : i32
    %c0_i32_0 = arith.constant 0 : i32
    return %arg0, %c0_i32, %arg1 : i32, i32, i32
  }
  func.func @transform_1(%arg0: i32, %arg1: i32) -> (i32, i32) {
    %c0_i32 = arith.constant 0 : i32
    %c0_i32_0 = arith.constant 0 : i32
    %c0_i32_1 = arith.constant 0 : i32
    return %c0_i32, %c0_i32_0 : i32, i32
  }
  func.func @transform_2(%arg0: i32, %arg1: i32) -> (i32, i32) {
    %c0_i32 = arith.constant 0 : i32
    %c0_i32_0 = arith.constant 0 : i32
    %c0_i32_1 = arith.constant 0 : i32
    return %c0_i32, %c0_i32_0 : i32, i32
  }
  func.func @transform_3(%arg0: i32, %arg1: i32) -> (i32, i32, i32) {
    %c0_i32 = arith.constant 0 : i32
    %c0_i32_0 = arith.constant 0 : i32
    return %arg0, %c0_i32, %arg1 : i32, i32, i32
  }
}

</mosaic_0001>

<llo_original>
// kernel: tpu_custom_call.1
$region0: #{tpu_custom_call.1}
  #allocation0 [shape = 'u32[]', space=smem, size = 0x4, offset = 0x4, fixed_abs, tag = 'smem constant byte address 0x4 - core index']
  #allocation1 [shape = 'u32[72,128]{1,0:T(1,128)}', space=vmem, size = 0x9000, scoped, tag = 'internal scratch']
  %s0 = inlined_call_operand.vmem [shape: bf16[2,4,256], index: 0, kind: input, shape index: {}]
  %s1 = inlined_call_operand.vmem [shape: bf16[32,4], index: 1, kind: input, shape index: {}]
  %s2 = inlined_call_operand.vmem [shape: f32[32,1], index: 2, kind: input, shape index: {}]
  %s3 = inlined_call_operand.hbm [shape: f32[2,32,256], index: 3, kind: output, shape index: {}]
  %s4 = sld [smem:[#allocation0]]
  $region45: #{tpu_custom_call.1} parent=0
    _
  %s6 = ssub.s32 1, %s4
  %s7 = scalar_select 0, %s6, %s4
  $region1: #{tpu_custom_call.1} parent=0
    #allocation2 [shape = 'u8[65536]{0}', space=vmem, size = 0x10000, scoped, tag = 'output window, operand 0']
    #allocation3 [shape = 's32[2]{0}', space=sflag, size = 0x8, scoped, tag = 'scoped memory for tpu_custom_call.1']
    %8 = vsyncpa [#allocation3], 0
    %s9 = scalar_lea.sflag [#allocation3], 1
    %10 = vsyncpa %s9, 0
    loop: start=0, step=1, limit=4
    $region2: #{tpu_custom_call.1} parent=1 // loop_pre_header
      _
    $region3: #{tpu_custom_call.1} parent=1 // loop_header
      %s12 = sphi 0, %s16
      %p13 = scmp.ge.s32.totalorder %s12, 4
      %s19 = sphi 0, %s31
      %s20 = sphi 0, %s27
      %s21 = sphi 0, %s19
      %s22 = sphi 0, %s20
      %s23 = sphi 0, %s21
      %s24 = sphi 0, %s22
      %s36 = sphi 0, %s38
      %s39 = sphi 0, %s36
      %s40 = sphi 0, %s39
      %s56 = sphi 0, %s40
      %s60 = sphi 0, %s60
      %s62 = sphi 0, %s60
      %s63 = sphi 0, %s62
      %s77 = sphi 0, %s63
      %s81 = sphi 0, %s81
      %s83 = sphi 0, %s81
      %s84 = sphi 0, %s83
      %s98 = sphi 0, %s84
      %s106 = sphi 0, %s108
      %s109 = sphi 0, %s106
      %s110 = sphi 0, %s109
      %s126 = sphi 0, %s110
    $region4: #{tpu_custom_call.1} parent=1 // loop_header_branch
      %15 = sbr.rel (%p13) target = $region8
    $region5: #{tpu_custom_call.1} parent=1 // loop_body
      %s17 = ssub.s32 %s12, 1
      %s18 = ssub.s32 %s12, 2
      %s25 = sadd.s32 1, %s20
      %p26 = scmp.ge.s32.totalorder %s25, 1
      %s27 = scalar_select %p26, 0, %s25
      %s28 = sadd.s32 1, %s19
      %s29 = scalar_select %p26, %s28, %s19
      %p30 = scmp.ge.s32.totalorder %s29, 2
      %s31 = scalar_select %p30, 0, %s29
      %s32 = ssub.s32 %s19, %s31
      %s33 = ssub.s32 %s20, %s27
      %s34 = sor.u32 %s32, %s33
      %p35 = scmp.eq.s32.totalorder %s34, 0
      %s37 = sadd.s32 %s36, 1
      %s38 = scalar_select %p35, %s36, %s37
      %p41 = pneg %p35
      %p42 = scmp.eq.s32.totalorder %s12, 1
      %p43 = por %p41, %p42
      %p44 = scmp.ne.s32.totalorder %s36, %s39
      %p45 = scmp.eq.s32.totalorder %s12, 0
      %p46 = por %p44, %p45
      %p47 = scmp.ne.s32.totalorder %s36, %s39
      %p48 = scmp.eq.s32.totalorder %s17, 1
      %p49 = por %p47, %p48
      %p50 = scmp.ne.s32.totalorder %s39, %s40
      %p51 = scmp.eq.s32.totalorder %s17, 0
      %p52 = por %p50, %p51
      %p53 = scmp.ne.s32.totalorder %s39, %s40
      %p54 = scmp.eq.s32.totalorder %s18, 1
      %p55 = por %p53, %p54
      %p57 = scmp.ne.s32.totalorder %s40, %s56
      %p58 = scmp.eq.s32.totalorder %s18, 0
      %p59 = por %p57, %p58
      %s61 = sadd.s32 %s60, 1
      %p64 = scmp.eq.s32.totalorder %s12, 1
      %p65 = scmp.ne.s32.totalorder %s60, %s62
      %p66 = scmp.eq.s32.totalorder %s12, 0
      %p67 = por %p65, %p66
      %p68 = scmp.ne.s32.totalorder %s60, %s62
      %p69 = scmp.eq.s32.totalorder %s17, 1
      %p70 = por %p68, %p69
      %p71 = scmp.ne.s32.totalorder %s62, %s63
      %p72 = scmp.eq.s32.totalorder %s17, 0
      %p73 = por %p71, %p72
      %p74 = scmp.ne.s32.totalorder %s62, %s63
      %p75 = scmp.eq.s32.totalorder %s18, 1
      %p76 = por %p74, %p75
      %p78 = scmp.ne.s32.totalorder %s63, %s77
      %p79 = scmp.eq.s32.totalorder %s18, 0
      %p80 = por %p78, %p79
      %s82 = sadd.s32 %s81, 1
      %p85 = scmp.eq.s32.totalorder %s12, 1
      %p86 = scmp.ne.s32.totalorder %s81, %s83
      %p87 = scmp.eq.s32.totalorder %s12, 0
      %p88 = por %p86, %p87
      %p89 = scmp.ne.s32.totalorder %s81, %s83
      %p90 = scmp.eq.s32.totalorder %s17, 1
      %p91 = por %p89, %p90
      %p92 = scmp.ne.s32.totalorder %s83, %s84
      %p93 = scmp.eq.s32.totalorder %s17, 0
      %p94 = por %p92, %p93
      %p95 = scmp.ne.s32.totalorder %s83, %s84
      %p96 = scmp.eq.s32.totalorder %s18, 1
      %p97 = por %p95, %p96
      %p99 = scmp.ne.s32.totalorder %s84, %s98
      %p100 = scmp.eq.s32.totalorder %s18, 0
      %p101 = por %p99, %p100
      %s102 = ssub.s32 %s19, %s31
      %s103 = ssub.s32 %s20, %s27
      %s104 = sor.u32 %s102, %s103
      %p105 = scmp.eq.s32.totalorder %s104, 0
      %s107 = sadd.s32 %s106, 1
      %s108 = scalar_select %p105, %s106, %s107
      %p111 = pneg %p105
      %p112 = scmp.eq.s32.totalorder %s12, 1
      %p113 = por %p111, %p112
      %p114 = scmp.ne.s32.totalorder %s106, %s109
      %p115 = scmp.eq.s32.totalorder %s12, 0
      %p116 = por %p114, %p115
      %p117 = scmp.ne.s32.totalorder %s106, %s109
      %p118 = scmp.eq.s32.totalorder %s17, 1
      %p119 = por %p117, %p118
      %p120 = scmp.ne.s32.totalorder %s109, %s110
      %p121 = scmp.eq.s32.totalorder %s17, 0
      %p122 = por %p120, %p121
      %p123 = scmp.ne.s32.totalorder %s109, %s110
      %p124 = scmp.eq.s32.totalorder %s18, 1
      %p125 = por %p123, %p124
      %p127 = scmp.ne.s32.totalorder %s110, %s126
      %p128 = scmp.eq.s32.totalorder %s18, 0
      %p129 = por %p127, %p128
      %p130 = scmp.le.s32.totalorder 1, %s12
      %p131 = scmp.lt.s32.totalorder %s12, 3
      %p132 = pnand %p130, %p131
      %p133 = pneg %p132
      // Predicated region
      $region9: #{tpu_custom_call.1} parent=5 // pred_check
        _
      $region10: #{tpu_custom_call.1} parent=5 // pred_check_branch
        %135 = sbr.rel (%p132) target = $region12
      $region11: #{tpu_custom_call.1} parent=5 // pred_region
        %s136 = ssub.s32 %s12, 1
        // Predicated region
        $region13: #{tpu_custom_call.1} parent=11 // pred_check
          %p137 = pneg %p73
        $region14: #{tpu_custom_call.1} parent=11 // pred_check_branch
          %139 = sbr.rel (%p137) target = $region16
        $region15: #{tpu_custom_call.1} parent=11 // pred_region
          _
        $region16: #{tpu_custom_call.1} parent=11 // pred_fallthru
          _
        // Predicated region
        $region17: #{tpu_custom_call.1} parent=11 // pred_check
          %p140 = pneg %p94
        $region18: #{tpu_custom_call.1} parent=11 // pred_check_branch
          %142 = sbr.rel (%p140) target = $region20
        $region19: #{tpu_custom_call.1} parent=11 // pred_region
          _
        $region20: #{tpu_custom_call.1} parent=11 // pred_fallthru
          _
      $region12: #{tpu_custom_call.1} parent=5 // pred_fallthru
        _
      %p143 = scmp.lt.s32.totalorder %s12, 2
      // Predicated region
      $region21: #{tpu_custom_call.1} parent=5 // pred_check
        %p144 = pneg %p143
      $region22: #{tpu_custom_call.1} parent=5 // pred_check_branch
        %146 = sbr.rel (%p144) target = $region24
      $region23: #{tpu_custom_call.1} parent=5 // pred_region
        // Predicated region
        $region25: #{tpu_custom_call.1} parent=23 // pred_check
          %p147 = pneg %p46
        $region26: #{tpu_custom_call.1} parent=23 // pred_check_branch
          %149 = sbr.rel (%p147) target = $region28
        $region27: #{tpu_custom_call.1} parent=23 // pred_region
          %s150 = smul.u32 2, %s20
          %p151 = scmp.lt.s32.totalorder %s19, 1
          %s152 = scalar_select %p151, %s19, 1
          %p153 = scmp.lt.s32.totalorder %s150, 1
          %s154 = scalar_select %p153, %s150, 1
          %s155 = smul.addr %s152, 2
          %s156 = sadd.s32 %s154, %s155
          %s157 = smul.addr %s156, 2
          %s158 = scalar_lea.vmem %s0, %s157
          %s159 = smul.u32 2, %s20
        $region28: #{tpu_custom_call.1} parent=23 // pred_fallthru
          _
      $region24: #{tpu_custom_call.1} parent=5 // pred_fallthru
        _
      %p160 = scmp.le.s32.totalorder 1, %s12
      %p161 = scmp.lt.s32.totalorder %s12, 3
      %p162 = pnand %p160, %p161
      %p163 = pneg %p162
      // Predicated region
      $region29: #{tpu_custom_call.1} parent=5 // pred_check
        _
      $region30: #{tpu_custom_call.1} parent=5 // pred_check_branch
        %165 = sbr.rel (%p162) target = $region32
      $region31: #{tpu_custom_call.1} parent=5 // pred_region
        %s166 = ssub.s32 %s12, 1
        %s167 = smul.u32 2, %s22
        %p168 = scmp.lt.s32.totalorder %s21, 1
        %s169 = scalar_select %p168, %s21, 1
        %p170 = scmp.lt.s32.totalorder %s167, 1
        %s171 = scalar_select %p170, %s167, 1
        %s172 = smul.addr %s169, 2
        %s173 = sadd.s32 %s171, %s172
        %s174 = smul.addr %s173, 2
        %s175 = scalar_lea.vmem %s0, %s174
        %p176 = pneg %p52
        %p177 = pneg %p49
        %p178 = pneg %p73
        %p179 = pneg %p70
        %p180 = pneg %p94
        %p181 = pneg %p91
        %p182 = pneg %p122
        %p183 = pneg %p119
        %s184 = sand.u32 %s109, 1
        %s185 = scalar_lea.sflag [#allocation3], %s184
        %s186 = sand.u32 %s109, 1
        %s187 = smul.addr %s186, 64
        %s188 = scalar_lea.vmem [#allocation2], %s187
        %s189 = smul.u32 2, %s22
        %p190 = scmp.lt.s32.totalorder %s21, 1
        %s191 = scalar_select %p190, %s21, 1
        %p192 = scmp.lt.s32.totalorder %s189, 1
        %s193 = scalar_select %p192, %s189, 1
        %s194 = smul.addr %s191, 2
        %s195 = sadd.s32 %s193, %s194
        %s196 = smul.addr %s195, 2
        %s197 = scalar_lea.vmem %s0, %s196
        %s198 = smul.u32 2, %s22
        %s199 = smul.u32 2, %s22
        %v201 = vld [vmem:[%s1] sm:$0xf]
        %v202 = vld [vmem:[%s1 + $0x4] sm:$0xf]
        %v203 = vld [vmem:[%s1 + $0x8] sm:$0xf]
        %v204 = vld [vmem:[%s1 + $0xc] sm:$0xf]
        %v205 = vld [vmem:[%s197] sm:$0xf]
        %v206 = vld [vmem:[%s2] sm:$0xff]
        %v207 = vld [vmem:[%s2 + $0x8] sm:$0xff]
        %v208 = vld [vmem:[%s2 + $0x10] sm:$0xff]
        %v209 = vld [vmem:[%s2 + $0x18] sm:$0xff]
        %211 = vset.pattern.permute.xlu0 0
        %212 = vperm.xlu0 %211, %v206
        %v213 = vpop.permute.xlu0 %212
        %216 = vset.pattern.permute.xlu0 0
        %217 = vperm.xlu0 %216, %v207
        %v218 = vpop.permute.xlu0 %217
        %221 = vset.pattern.permute.xlu0 0
        %222 = vperm.xlu0 %221, %v208
        %v223 = vpop.permute.xlu0 %222
        %226 = vset.pattern.permute.xlu0 0
        %227 = vperm.xlu0 %226, %v209
        %v228 = vpop.permute.xlu0 %227
        %v234 = vunpack.c.l.b16 %v201
        %v235 = vunpack.c.l.b16 %v202
        %v236 = vunpack.c.l.b16 %v203
        %v237 = vunpack.c.l.b16 %v204
        %v238 = vpack.c.b16 %v235, %v234
        %v239 = vpack.c.b16 %v237, %v236
        %241 = vst [vmem:[#allocation1] ss:$4 sm:$0xff] %v205
        %v242 = vld.sshfl [vmem:[#allocation1] sm:$0xff pattern:$0x73625140]
        %v243 = vld.sshfl [vmem:[#allocation1 + $0x8] sm:$0xff pattern:$0x73625140]
        %vm244 = vcmask 31744
        %v246 = vsel %vm244, %v238, 0
        %v249 = vsel %vm244, %v239, 0
        %vm251 = vcmask 1041408
        %v252 = vsel %vm251, %v242, 0
        %v254 = vsel %vm251, %v243, 0
        %256 = vmatpush.bf16.msra.mxu0 0
        %257 = vmatpush.bf16.msra.mxu0 0
        %258 = vmatpush.bf16.msra.mxu0 0
        %259 = vmatpush.bf16.msra.mxu0 0
        %260 = vmatpush.bf16.msra.mxu0 0
        %261 = vmatpush.bf16.msra.mxu0 0
        %262 = vmatpush.bf16.msra.mxu0 0
        %263 = vmatpush.bf16.msra.mxu0 %v252
        %264 = vmatmul.bf16.gmra.mxu0 %v246
        %v265 = vpop.f32.mrf.mxu0
        %v266 = vadd.f32 %v213, %v265
        %v267 = vpop.f32.mrf.mxu0
        %v268 = vadd.f32 %v218, %v267
        %269 = vmatmul.bf16.gmra.mxu0 %v249
        %v270 = vpop.f32.mrf.mxu0
        %v271 = vadd.f32 %v223, %v270
        %v272 = vpop.f32.mrf.mxu0
        %v273 = vadd.f32 %v228, %v272
        %274 = vdwg.mxu0
        %275 = vmatpush.bf16.msra.mxu0 0
        %276 = vmatpush.bf16.msra.mxu0 0
        %277 = vmatpush.bf16.msra.mxu0 0
        %278 = vmatpush.bf16.msra.mxu0 0
        %279 = vmatpush.bf16.msra.mxu0 0
        %280 = vmatpush.bf16.msra.mxu0 0
        %281 = vmatpush.bf16.msra.mxu0 0
        %282 = vmatpush.bf16.msra.mxu0 %v254
        %283 = vmatmul.bf16.gmra.mxu0 %v246
        %v284 = vpop.f32.mrf.mxu0
        %v285 = vadd.f32 %v213, %v284
        %v286 = vpop.f32.mrf.mxu0
        %v287 = vadd.f32 %v218, %v286
        %288 = vmatmul.bf16.gmra.mxu0 %v249
        %v289 = vpop.f32.mrf.mxu0
        %v290 = vadd.f32 %v223, %v289
        %v291 = vpop.f32.mrf.mxu0
        %v292 = vadd.f32 %v228, %v291
        %293 = vdwg.mxu0
        %v294 = vmax.f32 %v266, 0.0
        %v295 = vmax.f32 %v285, 0.0
        %v296 = vmax.f32 %v268, 0.0
        %v297 = vmax.f32 %v287, 0.0
        %v298 = vmax.f32 %v271, 0.0
        %v299 = vmax.f32 %v290, 0.0
        %v300 = vmax.f32 %v273, 0.0
        %v301 = vmax.f32 %v292, 0.0
        %302 = vst [vmem:[%s188] sm:$0xff] %v294
        %303 = vst [vmem:[%s188 + $0x8] sm:$0xff] %v295
        %304 = vst [vmem:[%s188 + $0x10] sm:$0xff] %v296
        %305 = vst [vmem:[%s188 + $0x18] sm:$0xff] %v297
        %306 = vst [vmem:[%s188 + $0x20] sm:$0xff] %v298
        %307 = vst [vmem:[%s188 + $0x28] sm:$0xff] %v299
        %308 = vst [vmem:[%s188 + $0x30] sm:$0xff] %v300
        %309 = vst [vmem:[%s188 + $0x38] sm:$0xff] %v301
        %s310 = sand.u32 %s109, 1
        %s311 = scalar_lea.sflag [#allocation3], %s310
        %s312 = sand.u32 %s109, 1
        %s313 = smul.addr %s312, 64
        %s314 = scalar_lea.vmem [#allocation2], %s313
        // Predicated region
        $region33: #{tpu_custom_call.1} parent=31 // pred_check
          %p315 = pneg %p119
        $region34: #{tpu_custom_call.1} parent=31 // pred_check_branch
          %317 = sbr.rel (%p315) target = $region36
        $region35: #{tpu_custom_call.1} parent=31 // pred_region
          %s318 = smul.u32 2, %s22
          %320 = vsyncadd %s311, 0
          %s321 = smul.addr %s21, 8
          %s322 = sadd.s32 %s318, %s321
          %s323 = smul.addr %s322, 8
          %s324 = scalar_lea.hbm %s3, %s323
          %s325 = sshll.u32 %s314, 4
          %s326 = int_to_ptr.vmem [resolvable:$true] %s325
          %s327 = sshll.u32 %s324, 4
          %s328 = int_to_ptr.hbm [resolvable:$true] %s327
          %333 = dma.vmem_to_hbm [thread:$0]  %s326, 1024, %s328, %s311, 256, 256, 16
        $region36: #{tpu_custom_call.1} parent=31 // pred_fallthru
          _
      $region32: #{tpu_custom_call.1} parent=5 // pred_fallthru
        _
      %p334 = scmp.le.s32.totalorder 2, %s12
      // Predicated region
      $region37: #{tpu_custom_call.1} parent=5 // pred_check
        %p335 = pneg %p334
      $region38: #{tpu_custom_call.1} parent=5 // pred_check_branch
        %337 = sbr.rel (%p335) target = $region40
      $region39: #{tpu_custom_call.1} parent=5 // pred_region
        %s338 = ssub.s32 %s12, 2
        // Predicated region
        $region41: #{tpu_custom_call.1} parent=39 // pred_check
          %p339 = pneg %p125
        $region42: #{tpu_custom_call.1} parent=39 // pred_check_branch
          %341 = sbr.rel (%p339) target = $region44
        $region43: #{tpu_custom_call.1} parent=39 // pred_region
          %s342 = sand.u32 %s110, 1
          %s343 = scalar_lea.sflag [#allocation3], %s342
          %s344 = sand.u32 %s110, 1
          %s345 = smul.addr %s344, 64
          %s346 = scalar_lea.vmem [#allocation2], %s345
          %348 = dma.done %s343, 1024
        $region44: #{tpu_custom_call.1} parent=39 // pred_fallthru
          _
      $region40: #{tpu_custom_call.1} parent=5 // pred_fallthru
        _
    $region6: #{tpu_custom_call.1} parent=1 // loop_footer
      %s16 = sadd.s32 1, %s12
    $region7: #{tpu_custom_call.1} parent=1 // loop_footer_branch
      %11 = sbr.rel target = $region3
    $region8: #{tpu_custom_call.1} parent=1 // loop_exit
      _
    %349 = vsyncpa [#allocation3], 1
    %s350 = scalar_lea.sflag [#allocation3], 1
    %351 = vsyncpa %s350, 1

</llo_original>
